<compile_context>
chip_gen: v5e
topology: v5e:2x2
jax: 0.10.0
libtpu: 0.0.40
codegen_flags: <defaults>
</compile_context>

<pallas_src>
import functools

import jax
import jax.numpy as jnp
from jax.experimental import pallas as pl
from jax.experimental.pallas import tpu as pltpu


# ----------------------------- Pallas kernel ---------------------------------

def _channel_attention_kernel(x_ref, w1t_ref, w2t_ref, o_ref,
                              sum_acc, max_acc, *, inv_hw):
    """Fused global avg/max pool -> shared MLP (both branches) -> sigmoid.

    Grid = (N, n_hw_tiles); batch axis "parallel", spatial axis "arbitrary".

    x_ref  : [1, C, hw_tile]  native dtype (HW on lanes -> dense loads, lane reduce)
    w1t_ref: [C, Cr]          (PyTorch conv1 weight, 1x1 squeezed, pre-transposed)
    w2t_ref: [Cr, C]          (PyTorch conv2 weight, 1x1 squeezed, pre-transposed)
    o_ref  : [1, 1, C]        attention for this batch row (C lane-dense)
    sum_acc/max_acc: [1, C] f32 running accumulators (VMEM scratch)
    """
    k = pl.program_id(1)

    @pl.when(k == 0)
    def _init():
        sum_acc[...] = jnp.zeros_like(sum_acc)
        max_acc[...] = jnp.full_like(max_acc, -jnp.inf)

    xb = x_ref[...].astype(jnp.float32)                       # [1, C, hw_tile]
    sum_acc[...] += jnp.sum(xb, axis=-1)                      # [1, C]
    max_acc[...] = jnp.maximum(max_acc[...], jnp.max(xb, axis=-1))

    @pl.when(k == pl.num_programs(1) - 1)
    def _finalize():
        avg = sum_acc[...] * inv_hw                           # [1, C]
        pooled = jnp.concatenate([avg, max_acc[...]], axis=0) # [2, C]
        h = jnp.dot(pooled, w1t_ref[...],
                    preferred_element_type=jnp.float32)       # [2, Cr]
        h = jnp.maximum(h, 0.0)                               # ReLU
        z = jnp.dot(h, w2t_ref[...],
                    preferred_element_type=jnp.float32)       # [2, C]
        s = z[0:1, :] + z[1:2, :]                             # avg + max branch
        att = 1.0 / (1.0 + jnp.exp(-s))                       # sigmoid (EUP)
        o_ref[...] = att.reshape(o_ref.shape).astype(o_ref.dtype)


# ------------------------------- wrapper --------------------------------------

def _pick_hw_tile(hw, c, itemsize, block_budget_bytes=4 * 1024 * 1024):
    """Largest lane-aligned (multiple-of-128) divisor of hw whose x block
    (1, C, tile) fits the per-block budget.  Double-buffered, that stays under
    v5e's 16 MiB default scoped VMEM with room for weights/output/scratch."""
    if hw % 128 != 0 or c * hw * itemsize <= block_budget_bytes:
        # TODO(synk): for huge non-128-aligned HW, add a masked tail tile
        # instead of a single full-extent block.
        return hw
    for d in range(hw // 128, 0, -1):
        t = 128 * d
        if hw % t == 0 and c * t * itemsize <= block_budget_bytes:
            return t
    return 128  # even the smallest aligned tile busts the budget; take it anyway


def channel_attention(x_nchw, w1_pt, w2_pt, *, hw_tile=None):
    """ChannelAttentionModule.forward.

    x_nchw: [N, C, H, W]; w1_pt: [C//r, C, 1, 1]; w2_pt: [C, C//r, 1, 1]
    returns [N, C, 1, 1] (matches the PyTorch module).
    """
    N, C, H, W = x_nchw.shape
    Cr = w1_pt.shape[0]
    HW = H * W

    x3 = x_nchw.reshape(N, C, HW)                 # free reshape, native dtype
    w1t = w1_pt.reshape(Cr, C).T                  # [C, Cr]: pooled @ w1t
    w2t = w2_pt.reshape(C, Cr).T                  # [Cr, C]

    if hw_tile is None:
        hw_tile = _pick_hw_tile(HW, C, x3.dtype.itemsize)
    assert HW % hw_tile == 0, (HW, hw_tile)
    n_hw = HW // hw_tile

    w_bytes = (w1t.size * w1t.dtype.itemsize + w2t.size * w2t.dtype.itemsize)
    cost = pl.CostEstimate(
        flops=2 * N * C * HW + 8 * N * C * Cr,
        transcendentals=N * C,
        bytes_accessed=x3.size * x3.dtype.itemsize + w_bytes
                       + N * C * x3.dtype.itemsize,
    )

    out = pl.pallas_call(
        functools.partial(_channel_attention_kernel, inv_hw=1.0 / HW),
        out_shape=jax.ShapeDtypeStruct((N, 1, C), x_nchw.dtype),
        grid_spec=pltpu.PrefetchScalarGridSpec(
            num_scalar_prefetch=0,
            grid=(N, n_hw),
            in_specs=[
                pl.BlockSpec((1, C, hw_tile), lambda n, k: (n, 0, k)),
                pl.BlockSpec((C, Cr), lambda n, k: (0, 0)),
                pl.BlockSpec((Cr, C), lambda n, k: (0, 0)),
            ],
            out_specs=pl.BlockSpec((1, 1, C), lambda n, k: (n, 0, 0)),
            scratch_shapes=[
                pltpu.VMEM((1, C), jnp.float32),   # running sum
                pltpu.VMEM((1, C), jnp.float32),   # running max
            ],
        ),
        compiler_params=pltpu.CompilerParams(
            dimension_semantics=("parallel", "arbitrary")),
        cost_estimate=cost,
    )(x3, w1t, w2t)

    # (N, 1, C) -> (N, C, 1, 1): same memory order, free reshape.
    return out.reshape(N, C, 1, 1)


# ------------------------------ reference -------------------------------------

def _reference(x_nchw, w1_pt, w2_pt):
    N, C, H, W = x_nchw.shape
    Cr = w1_pt.shape[0]
    w1 = w1_pt.reshape(Cr, C)
    w2 = w2_pt.reshape(C, Cr)

    def mlp(v):                                   # v: [N, C]
        return jnp.maximum(v @ w1.T, 0.0) @ w2.T

    avg = jnp.mean(x_nchw, axis=(2, 3))
    mx = jnp.max(x_nchw, axis=(2, 3))
    return jax.nn.sigmoid(mlp(avg) + mlp(mx)).reshape(N, C, 1, 1)


# -------------------------------- driver --------------------------------------

if __name__ == "__main__":
    key = jax.random.PRNGKey(0)
    kx, k1, k2 = jax.random.split(key, 3)

    N, C, H, W = 2, 32, 16, 16        # channel=32, ratio=4 -> hidden Cr=8
    ratio = 4
    Cr = C // ratio

    x = jax.random.normal(kx, (N, C, H, W), jnp.float32)
    # PyTorch Conv2d weights: [out_channels, in_channels, 1, 1], bias=False.
    w1 = 0.2 * jax.random.normal(k1, (Cr, C, 1, 1), jnp.float32)
    w2 = 0.2 * jax.random.normal(k2, (C, Cr, 1, 1), jnp.float32)

    ref = _reference(x, w1, w2)

    # Auto-picked tile (single spatial tile at this toy size).
    out = jax.block_until_ready(jax.jit(channel_attention)(x, w1, w2))
    assert out.shape == (N, C, 1, 1), out.shape
    assert bool(jnp.all(jnp.isfinite(out)))
    assert bool(jnp.allclose(out, ref, atol=1e-5, rtol=1e-5)), \
        float(jnp.max(jnp.abs(out - ref)))

    # Force the multi-step accumulating grid (HW=256 -> 2 spatial tiles) so
    # the pipelined reduction / pl.when(last) finalize path is exercised too.
    out_tiled = jax.block_until_ready(
        jax.jit(functools.partial(channel_attention, hw_tile=128))(x, w1, w2))
    assert bool(jnp.allclose(out_tiled, ref, atol=1e-5, rtol=1e-5)), \
        float(jnp.max(jnp.abs(out_tiled - ref)))

    print("KERNEL_OK")
</pallas_src>

<mosaic_0001>
module attributes {stable_mosaic.version = 11 : i64} {
  func.func @_channel_attention_kernel(%arg0: i32, %arg1: i32, %arg2: memref<1x32x256xf32, #tpu.memory_space<vmem>>, %arg3: memref<32x8xf32, #tpu.memory_space<vmem>>, %arg4: memref<8x32xf32, #tpu.memory_space<vmem>>, %arg5: memref<1x1x32xf32, #tpu.memory_space<vmem>>, %arg6: memref<1x32xf32, #tpu.memory_space<vmem>>, %arg7: memref<1x32xf32, #tpu.memory_space<vmem>>) attributes {dimension_semantics = [#tpu.dimension_semantics<parallel>, #tpu.dimension_semantics<arbitrary>], iteration_bounds = array<i64: 2, 1>, scalar_prefetch = 0 : i64, scratch_operands = 2 : i64, tpu.core_type = #tpu.core_type<tc>, window_params = [{transform_indices = @transform_0, window_bounds = array<i64: 1, 32, 256>}, {pipeline_mode = #tpu.pipeline_mode<synchronous>, transform_indices = @transform_1, window_bounds = array<i64: 32, 8>}, {pipeline_mode = #tpu.pipeline_mode<synchronous>, transform_indices = @transform_2, window_bounds = array<i64: 8, 32>}, {transform_indices = @transform_3, window_bounds = array<i64: 1, 1, 32>}]} {
    %c0_i32 = arith.constant 0 : i32
    %0 = arith.cmpi eq, %arg1, %c0_i32 : i32
    %1 = arith.extui %0 : i1 to i32
    %c0_i32_0 = arith.constant 0 : i32
    %2 = arith.cmpi ne, %1, %c0_i32_0 : i32
    scf.if %2 {
      %cst_14 = arith.constant 0.000000e+00 : f32
      %15 = vector.broadcast %cst_14 : f32 to vector<1x32xf32>
      %c0_15 = arith.constant 0 : index
      %c0_16 = arith.constant 0 : index
      %16 = vector.load %arg6[%c0_15, %c0_16] : memref<1x32xf32, #tpu.memory_space<vmem>>, vector<1x32xf32>
      tpu.vector_store %arg6[%c0_15, %c0_16], %15 {strides = array<i32>} : memref<1x32xf32, #tpu.memory_space<vmem>>, vector<1x32xf32>,
      %cst_17 = arith.constant 0xFF800000 : f32
      %17 = vector.broadcast %cst_17 : f32 to vector<1x32xf32>
      %c0_18 = arith.constant 0 : index
      %c0_19 = arith.constant 0 : index
      %18 = vector.load %arg7[%c0_18, %c0_19] : memref<1x32xf32, #tpu.memory_space<vmem>>, vector<1x32xf32>
      tpu.vector_store %arg7[%c0_18, %c0_19], %17 {strides = array<i32>} : memref<1x32xf32, #tpu.memory_space<vmem>>, vector<1x32xf32>,
    } else {
    }
    %c0 = arith.constant 0 : index
    %c0_1 = arith.constant 0 : index
    %c0_2 = arith.constant 0 : index
    %3 = vector.load %arg2[%c0, %c0_1, %c0_2] : memref<1x32x256xf32, #tpu.memory_space<vmem>>, vector<1x32x256xf32>
    %c0_3 = arith.constant 0 : index
    %c0_4 = arith.constant 0 : index
    %4 = vector.load %arg6[%c0_3, %c0_4] : memref<1x32xf32, #tpu.memory_space<vmem>>, vector<1x32xf32>
    %cst = arith.constant dense<0.000000e+00> : vector<1x32xf32>
    %5 = vector.multi_reduction <add>, %3, %cst [2] : vector<1x32x256xf32> to vector<1x32xf32>
    %6 = arith.addf %4, %5 : vector<1x32xf32>
    %c0_5 = arith.constant 0 : index
    %c0_6 = arith.constant 0 : index
    %7 = vector.load %arg6[%c0_5, %c0_6] : memref<1x32xf32, #tpu.memory_space<vmem>>, vector<1x32xf32>
    tpu.vector_store %arg6[%c0_5, %c0_6], %6 {strides = array<i32>} : memref<1x32xf32, #tpu.memory_space<vmem>>, vector<1x32xf32>,
    %c0_7 = arith.constant 0 : index
    %c0_8 = arith.constant 0 : index
    %8 = vector.load %arg7[%c0_7, %c0_8] : memref<1x32xf32, #tpu.memory_space<vmem>>, vector<1x32xf32>
    %cst_9 = arith.constant dense<0xFF800000> : vector<1x32xf32>
    %9 = vector.multi_reduction <maximumf>, %3, %cst_9 [2] : vector<1x32x256xf32> to vector<1x32xf32>
    %10 = arith.maximumf %8, %9 : vector<1x32xf32>
    %c0_10 = arith.constant 0 : index
    %c0_11 = arith.constant 0 : index
    %11 = vector.load %arg7[%c0_10, %c0_11] : memref<1x32xf32, #tpu.memory_space<vmem>>, vector<1x32xf32>
    tpu.vector_store %arg7[%c0_10, %c0_11], %10 {strides = array<i32>} : memref<1x32xf32, #tpu.memory_space<vmem>>, vector<1x32xf32>,
    %c0_i32_12 = arith.constant 0 : i32
    %12 = arith.cmpi eq, %arg1, %c0_i32_12 : i32
    %13 = arith.extui %12 : i1 to i32
    %c0_i32_13 = arith.constant 0 : i32
    %14 = arith.cmpi ne, %13, %c0_i32_13 : i32
    scf.if %14 {
      %c0_14 = arith.constant 0 : index
      %c0_15 = arith.constant 0 : index
      %15 = vector.load %arg6[%c0_14, %c0_15] : memref<1x32xf32, #tpu.memory_space<vmem>>, vector<1x32xf32>
      %cst_16 = arith.constant 3.906250e-03 : f32
      %16 = vector.broadcast %cst_16 : f32 to vector<1x32xf32>
      %17 = arith.mulf %15, %16 : vector<1x32xf32>
      %c0_17 = arith.constant 0 : index
      %c0_18 = arith.constant 0 : index
      %18 = vector.load %arg7[%c0_17, %c0_18] : memref<1x32xf32, #tpu.memory_space<vmem>>, vector<1x32xf32>
      %19 = tpu.concatenate %17, %18 in 0 : vector<1x32xf32>, vector<1x32xf32> -> vector<2x32xf32>
      %c0_19 = arith.constant 0 : index
      %c0_20 = arith.constant 0 : index
      %20 = vector.load %arg3[%c0_19, %c0_20] : memref<32x8xf32, #tpu.memory_space<vmem>>, vector<32x8xf32>
      %cst_21 = arith.constant dense<0.000000e+00> : vector<2x8xf32>
      %21 = tpu.matmul %19, %20, %cst_21 {dimension_numbers = #tpu.dot_dimension_numbers<[1], [0], [0], [1], [0, 0, 1, 1], [], []>} : vector<2x32xf32>, vector<32x8xf32>, vector<2x8xf32> -> vector<2x8xf32>
      %cst_22 = arith.constant 0.000000e+00 : f32
      %22 = vector.broadcast %cst_22 : f32 to vector<2x8xf32>
      %23 = arith.maximumf %21, %22 : vector<2x8xf32>
      %c0_23 = arith.constant 0 : index
      %c0_24 = arith.constant 0 : index
      %24 = vector.load %arg4[%c0_23, %c0_24] : memref<8x32xf32, #tpu.memory_space<vmem>>, vector<8x32xf32>
      %cst_25 = arith.constant dense<0.000000e+00> : vector<2x32xf32>
      %25 = tpu.matmul %23, %24, %cst_25 {dimension_numbers = #tpu.dot_dimension_numbers<[1], [0], [0], [1], [0, 0, 1, 1], [], []>} : vector<2x8xf32>, vector<8x32xf32>, vector<2x32xf32> -> vector<2x32xf32>
      %26 = vector.extract_strided_slice %25 {offsets = [0, 0], sizes = [1, 32], strides = [1, 1]} : vector<2x32xf32> to vector<1x32xf32>
      %27 = vector.extract_strided_slice %25 {offsets = [1, 0], sizes = [1, 32], strides = [1, 1]} : vector<2x32xf32> to vector<1x32xf32>
      %28 = arith.addf %26, %27 : vector<1x32xf32>
      %cst_26 = arith.constant 0.000000e+00 : f32
      %29 = vector.broadcast %cst_26 : f32 to vector<1x32xf32>
      %30 = arith.subf %29, %28 : vector<1x32xf32>
      %31 = math.exp %30 : vector<1x32xf32>
      %cst_27 = arith.constant 1.000000e+00 : f32
      %32 = vector.broadcast %cst_27 : f32 to vector<1x32xf32>
      %33 = arith.addf %32, %31 : vector<1x32xf32>
      %cst_28 = arith.constant 1.000000e+00 : f32
      %34 = vector.broadcast %cst_28 : f32 to vector<1x32xf32>
      %35 = arith.divf %34, %33 : vector<1x32xf32>
      %36 = vector.shape_cast %35 : vector<1x32xf32> to vector<1x1x32xf32>
      %c0_29 = arith.constant 0 : index
      %c0_30 = arith.constant 0 : index
      %c0_31 = arith.constant 0 : index
      %37 = vector.load %arg5[%c0_29, %c0_30, %c0_31] : memref<1x1x32xf32, #tpu.memory_space<vmem>>, vector<1x1x32xf32>
      tpu.vector_store %arg5[%c0_29, %c0_30, %c0_31], %36 {strides = array<i32>} : memref<1x1x32xf32, #tpu.memory_space<vmem>>, vector<1x1x32xf32>,
    } else {
    }
    return
  }
  func.func @transform_0(%arg0: i32, %arg1: i32) -> (i32, i32, i32) {
    %c0_i32 = arith.constant 0 : i32
    %c0_i32_0 = arith.constant 0 : i32
    return %arg0, %c0_i32, %arg1 : i32, i32, i32
  }
  func.func @transform_1(%arg0: i32, %arg1: i32) -> (i32, i32) {
    %c0_i32 = arith.constant 0 : i32
    %c0_i32_0 = arith.constant 0 : i32
    %c0_i32_1 = arith.constant 0 : i32
    return %c0_i32, %c0_i32_0 : i32, i32
  }
  func.func @transform_2(%arg0: i32, %arg1: i32) -> (i32, i32) {
    %c0_i32 = arith.constant 0 : i32
    %c0_i32_0 = arith.constant 0 : i32
    %c0_i32_1 = arith.constant 0 : i32
    return %c0_i32, %c0_i32_0 : i32, i32
  }
  func.func @transform_3(%arg0: i32, %arg1: i32) -> (i32, i32, i32) {
    %c0_i32 = arith.constant 0 : i32
    %c0_i32_0 = arith.constant 0 : i32
    %c0_i32_1 = arith.constant 0 : i32
    return %arg0, %c0_i32, %c0_i32_0 : i32, i32, i32
  }
}

</mosaic_0001>

<llo_original>
// kernel: channel_attention.1
$region0: #{channel_attention.1}
  #allocation0 [shape = 'u32[]', space=smem, size = 0x4, offset = 0x4, fixed_abs, tag = 'smem constant byte address 0x4 - core index']
  #allocation1 [shape = 'u32[72,128]{1,0:T(1,128)}', space=vmem, size = 0x9000, scoped, tag = 'internal scratch']
  #allocation2 [shape = 'f32[1,32]{1,0:T(1,128)}', space=vmem, size = 0x200, scoped, tag = 'scratch operand']
  #allocation3 [shape = 'f32[1,32]{1,0:T(1,128)}', space=vmem, size = 0x200, scoped, tag = 'scratch operand']
  %s0 = inlined_call_operand.vmem [shape: f32[2,32,256], index: 0, kind: input, shape index: {}]
  %s1 = inlined_call_operand.vmem [shape: f32[32,8], index: 1, kind: input, shape index: {}]
  %s2 = inlined_call_operand.vmem [shape: f32[8,32], index: 2, kind: input, shape index: {}]
  %s3 = inlined_call_operand.hbm [shape: f32[2,1,32], index: 3, kind: output, shape index: {}]
  %s4 = sld [smem:[#allocation0]]
  $region53: #{channel_attention.1} parent=0
    _
  %s6 = ssub.s32 1, %s4
  %s7 = scalar_select 0, %s6, %s4
  $region1: #{channel_attention.1} parent=0
    #allocation4 [shape = 'u8[1024]{0}', space=vmem, size = 0x400, scoped, tag = 'output window, operand 0']
    #allocation5 [shape = 's32[2]{0}', space=sflag, size = 0x8, scoped, tag = 'scoped memory for channel_attention.1']
    %8 = vsyncpa [#allocation5], 0
    %s9 = scalar_lea.sflag [#allocation5], 1
    %10 = vsyncpa %s9, 0
    loop: start=0, step=1, limit=4
    $region2: #{channel_attention.1} parent=1 // loop_pre_header
      _
    $region3: #{channel_attention.1} parent=1 // loop_header
      %s12 = sphi 0, %s16
      %p13 = scmp.ge.s32.totalorder %s12, 4
      %s19 = sphi 0, %s31
      %s20 = sphi 0, %s27
      %s21 = sphi 0, %s19
      %s22 = sphi 0, %s20
      %s23 = sphi 0, %s21
      %s24 = sphi 0, %s22
      %s36 = sphi 0, %s38
      %s39 = sphi 0, %s36
      %s40 = sphi 0, %s39
      %s56 = sphi 0, %s40
      %s60 = sphi 0, %s60
      %s62 = sphi 0, %s60
      %s63 = sphi 0, %s62
      %s77 = sphi 0, %s63
      %s81 = sphi 0, %s81
      %s83 = sphi 0, %s81
      %s84 = sphi 0, %s83
      %s98 = sphi 0, %s84
      %s104 = sphi 0, %s106
      %s107 = sphi 0, %s104
      %s108 = sphi 0, %s107
      %s124 = sphi 0, %s108
    $region4: #{channel_attention.1} parent=1 // loop_header_branch
      %15 = sbr.rel (%p13) target = $region8
    $region5: #{channel_attention.1} parent=1 // loop_body
      %s17 = ssub.s32 %s12, 1
      %s18 = ssub.s32 %s12, 2
      %s25 = sadd.s32 1, %s20
      %p26 = scmp.ge.s32.totalorder %s25, 1
      %s27 = scalar_select %p26, 0, %s25
      %s28 = sadd.s32 1, %s19
      %s29 = scalar_select %p26, %s28, %s19
      %p30 = scmp.ge.s32.totalorder %s29, 2
      %s31 = scalar_select %p30, 0, %s29
      %s32 = ssub.s32 %s19, %s31
      %s33 = ssub.s32 %s20, %s27
      %s34 = sor.u32 %s32, %s33
      %p35 = scmp.eq.s32.totalorder %s34, 0
      %s37 = sadd.s32 %s36, 1
      %s38 = scalar_select %p35, %s36, %s37
      %p41 = pneg %p35
      %p42 = scmp.eq.s32.totalorder %s12, 1
      %p43 = por %p41, %p42
      %p44 = scmp.ne.s32.totalorder %s36, %s39
      %p45 = scmp.eq.s32.totalorder %s12, 0
      %p46 = por %p44, %p45
      %p47 = scmp.ne.s32.totalorder %s36, %s39
      %p48 = scmp.eq.s32.totalorder %s17, 1
      %p49 = por %p47, %p48
      %p50 = scmp.ne.s32.totalorder %s39, %s40
      %p51 = scmp.eq.s32.totalorder %s17, 0
      %p52 = por %p50, %p51
      %p53 = scmp.ne.s32.totalorder %s39, %s40
      %p54 = scmp.eq.s32.totalorder %s18, 1
      %p55 = por %p53, %p54
      %p57 = scmp.ne.s32.totalorder %s40, %s56
      %p58 = scmp.eq.s32.totalorder %s18, 0
      %p59 = por %p57, %p58
      %s61 = sadd.s32 %s60, 1
      %p64 = scmp.eq.s32.totalorder %s12, 1
      %p65 = scmp.ne.s32.totalorder %s60, %s62
      %p66 = scmp.eq.s32.totalorder %s12, 0
      %p67 = por %p65, %p66
      %p68 = scmp.ne.s32.totalorder %s60, %s62
      %p69 = scmp.eq.s32.totalorder %s17, 1
      %p70 = por %p68, %p69
      %p71 = scmp.ne.s32.totalorder %s62, %s63
      %p72 = scmp.eq.s32.totalorder %s17, 0
      %p73 = por %p71, %p72
      %p74 = scmp.ne.s32.totalorder %s62, %s63
      %p75 = scmp.eq.s32.totalorder %s18, 1
      %p76 = por %p74, %p75
      %p78 = scmp.ne.s32.totalorder %s63, %s77
      %p79 = scmp.eq.s32.totalorder %s18, 0
      %p80 = por %p78, %p79
      %s82 = sadd.s32 %s81, 1
      %p85 = scmp.eq.s32.totalorder %s12, 1
      %p86 = scmp.ne.s32.totalorder %s81, %s83
      %p87 = scmp.eq.s32.totalorder %s12, 0
      %p88 = por %p86, %p87
      %p89 = scmp.ne.s32.totalorder %s81, %s83
      %p90 = scmp.eq.s32.totalorder %s17, 1
      %p91 = por %p89, %p90
      %p92 = scmp.ne.s32.totalorder %s83, %s84
      %p93 = scmp.eq.s32.totalorder %s17, 0
      %p94 = por %p92, %p93
      %p95 = scmp.ne.s32.totalorder %s83, %s84
      %p96 = scmp.eq.s32.totalorder %s18, 1
      %p97 = por %p95, %p96
      %p99 = scmp.ne.s32.totalorder %s84, %s98
      %p100 = scmp.eq.s32.totalorder %s18, 0
      %p101 = por %p99, %p100
      %s102 = ssub.s32 %s19, %s31
      %p103 = scmp.eq.s32.totalorder %s102, 0
      %s105 = sadd.s32 %s104, 1
      %s106 = scalar_select %p103, %s104, %s105
      %p109 = pneg %p103
      %p110 = scmp.eq.s32.totalorder %s12, 1
      %p111 = por %p109, %p110
      %p112 = scmp.ne.s32.totalorder %s104, %s107
      %p113 = scmp.eq.s32.totalorder %s12, 0
      %p114 = por %p112, %p113
      %p115 = scmp.ne.s32.totalorder %s104, %s107
      %p116 = scmp.eq.s32.totalorder %s17, 1
      %p117 = por %p115, %p116
      %p118 = scmp.ne.s32.totalorder %s107, %s108
      %p119 = scmp.eq.s32.totalorder %s17, 0
      %p120 = por %p118, %p119
      %p121 = scmp.ne.s32.totalorder %s107, %s108
      %p122 = scmp.eq.s32.totalorder %s18, 1
      %p123 = por %p121, %p122
      %p125 = scmp.ne.s32.totalorder %s108, %s124
      %p126 = scmp.eq.s32.totalorder %s18, 0
      %p127 = por %p125, %p126
      %p128 = scmp.le.s32.totalorder 1, %s12
      %p129 = scmp.lt.s32.totalorder %s12, 3
      %p130 = pnand %p128, %p129
      %p131 = pneg %p130
      // Predicated region
      $region9: #{channel_attention.1} parent=5 // pred_check
        _
      $region10: #{channel_attention.1} parent=5 // pred_check_branch
        %133 = sbr.rel (%p130) target = $region12
      $region11: #{channel_attention.1} parent=5 // pred_region
        %s134 = ssub.s32 %s12, 1
        // Predicated region
        $region13: #{channel_attention.1} parent=11 // pred_check
          %p135 = pneg %p73
        $region14: #{channel_attention.1} parent=11 // pred_check_branch
          %137 = sbr.rel (%p135) target = $region16
        $region15: #{channel_attention.1} parent=11 // pred_region
          _
        $region16: #{channel_attention.1} parent=11 // pred_fallthru
          _
        // Predicated region
        $region17: #{channel_attention.1} parent=11 // pred_check
          %p138 = pneg %p94
        $region18: #{channel_attention.1} parent=11 // pred_check_branch
          %140 = sbr.rel (%p138) target = $region20
        $region19: #{channel_attention.1} parent=11 // pred_region
          _
        $region20: #{channel_attention.1} parent=11 // pred_fallthru
          _
      $region12: #{channel_attention.1} parent=5 // pred_fallthru
        _
      %p141 = scmp.lt.s32.totalorder %s12, 2
      // Predicated region
      $region21: #{channel_attention.1} parent=5 // pred_check
        %p142 = pneg %p141
      $region22: #{channel_attention.1} parent=5 // pred_check_branch
        %144 = sbr.rel (%p142) target = $region24
      $region23: #{channel_attention.1} parent=5 // pred_region
        // Predicated region
        $region25: #{channel_attention.1} parent=23 // pred_check
          %p145 = pneg %p46
        $region26: #{channel_attention.1} parent=23 // pred_check_branch
          %147 = sbr.rel (%p145) target = $region28
        $region27: #{channel_attention.1} parent=23 // pred_region
          %s148 = smul.u32 2, %s20
          %p149 = scmp.lt.s32.totalorder %s19, 1
          %s150 = scalar_select %p149, %s19, 1
          %p151 = scmp.lt.s32.totalorder %s148, 1
          %s152 = scalar_select %p151, %s148, 1
          %s153 = smul.addr %s150, 8
          %s154 = sadd.s32 %s152, %s153
          %s155 = smul.addr %s154, 8
          %s156 = scalar_lea.vmem %s0, %s155
          %s157 = smul.u32 2, %s20
        $region28: #{channel_attention.1} parent=23 // pred_fallthru
          _
      $region24: #{channel_attention.1} parent=5 // pred_fallthru
        _
      %p158 = scmp.le.s32.totalorder 1, %s12
      %p159 = scmp.lt.s32.totalorder %s12, 3
      %p160 = pnand %p158, %p159
      %p161 = pneg %p160
      // Predicated region
      $region29: #{channel_attention.1} parent=5 // pred_check
        _
      $region30: #{channel_attention.1} parent=5 // pred_check_branch
        %163 = sbr.rel (%p160) target = $region32
      $region31: #{channel_attention.1} parent=5 // pred_region
        %s164 = ssub.s32 %s12, 1
        %s165 = smul.u32 2, %s22
        %p166 = scmp.lt.s32.totalorder %s21, 1
        %s167 = scalar_select %p166, %s21, 1
        %p168 = scmp.lt.s32.totalorder %s165, 1
        %s169 = scalar_select %p168, %s165, 1
        %s170 = smul.addr %s167, 8
        %s171 = sadd.s32 %s169, %s170
        %s172 = smul.addr %s171, 8
        %s173 = scalar_lea.vmem %s0, %s172
        %p174 = pneg %p52
        %p175 = pneg %p49
        %p176 = pneg %p73
        %p177 = pneg %p70
        %p178 = pneg %p94
        %p179 = pneg %p91
        %p180 = pneg %p120
        %p181 = pneg %p117
        %s182 = sand.u32 %s107, 1
        %s183 = scalar_lea.sflag [#allocation5], %s182
        %s184 = sand.u32 %s107, 1
        %s185 = scalar_lea.vmem [#allocation4], %s184
        %s186 = smul.u32 2, %s22
        %p187 = scmp.lt.s32.totalorder %s21, 1
        %s188 = scalar_select %p187, %s21, 1
        %p189 = scmp.lt.s32.totalorder %s186, 1
        %s190 = scalar_select %p189, %s186, 1
        %s191 = smul.addr %s188, 8
        %s192 = sadd.s32 %s190, %s191
        %s193 = smul.addr %s192, 8
        %s194 = scalar_lea.vmem %s0, %s193
        %s195 = smul.u32 2, %s22
        %p196 = scmp.eq.s32.totalorder %s22, 0
        // Predicated region
        $region33: #{channel_attention.1} parent=31 // pred_check
          %p197 = pneg %p196
        $region34: #{channel_attention.1} parent=31 // pred_check_branch
          %199 = sbr.rel (%p197) target = $region36
        $region35: #{channel_attention.1} parent=31 // pred_region
          %vm200 = vcmask 253952
          %201 = vst.msk [vmem:[#allocation2] sm:$0x1] %vm200, 0.0
          %202 = vst.msk [vmem:[#allocation3] sm:$0x1] %vm200, -inf
        $region36: #{channel_attention.1} parent=31 // pred_fallthru
          _
        %v203 = vld [vmem:[%s194] sm:$0xff]
        %v204 = vld [vmem:[%s194 + $0x8] sm:$0xff]
        %v205 = vld [vmem:[%s194 + $0x10] sm:$0xff]
        %v206 = vld [vmem:[%s194 + $0x18] sm:$0xff]
        %v207 = vld [vmem:[%s194 + $0x20] sm:$0xff]
        %v208 = vld [vmem:[%s194 + $0x28] sm:$0xff]
        %v209 = vld [vmem:[%s194 + $0x30] sm:$0xff]
        %v210 = vld [vmem:[%s194 + $0x38] sm:$0xff]
        %v211 = vld [vmem:[#allocation2] sm:$0x1]
        %v212 = vadd.f32 %v203, %v204
        %213 = vadd.xlane.f32.xlu0 %v212
        %v214 = vpop.xlane.xlu0 %213
        %v215 = vadd.f32 %v205, %v206
        %216 = vadd.xlane.f32.xlu0 %v215
        %v217 = vpop.xlane.xlu0 %216
        %v218 = vadd.f32 %v207, %v208
        %219 = vadd.xlane.f32.xlu0 %v218
        %v220 = vpop.xlane.xlu0 %219
        %v221 = vadd.f32 %v209, %v210
        %222 = vadd.xlane.f32.xlu0 %v221
        %v223 = vpop.xlane.xlu0 %222
        %v228 = vperm.slane %v214, 0
        %v229 = vperm.slane %v214, 1
        %v230 = vperm.slane %v214, 2
        %v231 = vperm.slane %v214, 3
        %v232 = vperm.slane %v214, 4
        %v233 = vperm.slane %v214, 5
        %v234 = vperm.slane %v214, 6
        %v235 = vperm.slane %v214, 7
        %v236 = vperm.slane %v217, 0
        %v237 = vperm.slane %v217, 1
        %v238 = vperm.slane %v217, 2
        %v239 = vperm.slane %v217, 3
        %v240 = vperm.slane %v217, 4
        %v241 = vperm.slane %v217, 5
        %v242 = vperm.slane %v217, 6
        %v243 = vperm.slane %v217, 7
        %v244 = vperm.slane %v220, 0
        %v245 = vperm.slane %v220, 1
        %v246 = vperm.slane %v220, 2
        %v247 = vperm.slane %v220, 3
        %v248 = vperm.slane %v220, 4
        %v249 = vperm.slane %v220, 5
        %v250 = vperm.slane %v220, 6
        %v251 = vperm.slane %v220, 7
        %v252 = vperm.slane %v223, 0
        %v253 = vperm.slane %v223, 1
        %v254 = vperm.slane %v223, 2
        %v255 = vperm.slane %v223, 3
        %v256 = vperm.slane %v223, 4
        %v257 = vperm.slane %v223, 5
        %v258 = vperm.slane %v223, 6
        %v259 = vperm.slane %v223, 7
        %260 = vst [vmem:[#allocation1] ss:$9 sm:$0xff] %v228
        %s261 = scalar_lea.vmem [#allocation1], 1
        %262 = vst [vmem:[%s261] ss:$9 sm:$0xff] %v229
        %s263 = scalar_lea.vmem [#allocation1], 2
        %264 = vst [vmem:[%s263] ss:$9 sm:$0xff] %v230
        %s265 = scalar_lea.vmem [#allocation1], 3
        %266 = vst [vmem:[%s265] ss:$9 sm:$0xff] %v231
        %s267 = scalar_lea.vmem [#allocation1], 4
        %268 = vst [vmem:[%s267] ss:$9 sm:$0xff] %v232
        %s269 = scalar_lea.vmem [#allocation1], 5
        %270 = vst [vmem:[%s269] ss:$9 sm:$0xff] %v233
        %s271 = scalar_lea.vmem [#allocation1], 6
        %272 = vst [vmem:[%s271] ss:$9 sm:$0xff] %v234
        %s273 = scalar_lea.vmem [#allocation1], 7
        %274 = vst [vmem:[%s273] ss:$9 sm:$0xff] %v235
        %v275 = vld [vmem:[#allocation1] sm:$0xff]
        %276 = vst [vmem:[#allocation1] ss:$9 sm:$0xff] %v236
        %277 = vst [vmem:[%s261] ss:$9 sm:$0xff] %v237
        %278 = vst [vmem:[%s263] ss:$9 sm:$0xff] %v238
        %279 = vst [vmem:[%s265] ss:$9 sm:$0xff] %v239
        %280 = vst [vmem:[%s267] ss:$9 sm:$0xff] %v240
        %281 = vst [vmem:[%s269] ss:$9 sm:$0xff] %v241
        %282 = vst [vmem:[%s271] ss:$9 sm:$0xff] %v242
        %283 = vst [vmem:[%s273] ss:$9 sm:$0xff] %v243
        %v284 = vld [vmem:[#allocation1] sm:$0xff]
        %285 = vst [vmem:[#allocation1] ss:$9 sm:$0xff] %v244
        %286 = vst [vmem:[%s261] ss:$9 sm:$0xff] %v245
        %287 = vst [vmem:[%s263] ss:$9 sm:$0xff] %v246
        %288 = vst [vmem:[%s265] ss:$9 sm:$0xff] %v247
        %289 = vst [vmem:[%s267] ss:$9 sm:$0xff] %v248
        %290 = vst [vmem:[%s269] ss:$9 sm:$0xff] %v249
        %291 = vst [vmem:[%s271] ss:$9 sm:$0xff] %v250
        %292 = vst [vmem:[%s273] ss:$9 sm:$0xff] %v251
        %v293 = vld [vmem:[#allocation1] sm:$0xff]
        %294 = vst [vmem:[#allocation1] ss:$9 sm:$0xff] %v252
        %295 = vst [vmem:[%s261] ss:$9 sm:$0xff] %v253
        %296 = vst [vmem:[%s263] ss:$9 sm:$0xff] %v254
        %297 = vst [vmem:[%s265] ss:$9 sm:$0xff] %v255
        %298 = vst [vmem:[%s267] ss:$9 sm:$0xff] %v256
        %299 = vst [vmem:[%s269] ss:$9 sm:$0xff] %v257
        %300 = vst [vmem:[%s271] ss:$9 sm:$0xff] %v258
        %301 = vst [vmem:[%s273] ss:$9 sm:$0xff] %v259
        %v302 = vld [vmem:[#allocation1] sm:$0xff]
        %303 = vset.pattern.permute.xlu0 0
        %304 = vperm.xlu0 %303, %v275
        %v305 = vpop.permute.xlu0 %304
        %306 = vset.pattern.permute.xlu0 0
        %307 = vperm.xlu0 %306, %v284
        %v308 = vpop.permute.xlu0 %307
        %309 = vset.pattern.permute.xlu0 0
        %310 = vperm.xlu0 %309, %v293
        %v311 = vpop.permute.xlu0 %310
        %312 = vset.pattern.permute.xlu0 0
        %313 = vperm.xlu0 %312, %v302
        %v314 = vpop.permute.xlu0 %313
        %v315 = vlaneseq
        %v316 = vand.u32 %v315, 127
        %v317 = vperm.slane %v305, %v316
        %v318 = vadd.s32 %v316, 4294967288
        %v319 = vperm.slane %v308, %v318
        %vm320 = vcmask 130112
        %v321 = vsel %vm320, %v319, %v317
        %v322 = vadd.s32 %v316, 4294967280
        %v323 = vperm.slane %v311, %v322
        %vm324 = vcmask 195712
        %v325 = vsel %vm324, %v323, %v321
        %v326 = vadd.s32 %v316, 4294967272
        %v327 = vperm.slane %v314, %v326
        %vm328 = vcmask 261312
        %v329 = vsel %vm328, %v327, %v325
        %v331 = vadd.f32 %v211, %v329
        %vm332 = vcmask 253952
        %333 = vst.msk [vmem:[#allocation2] sm:$0x1] %vm332, %v331
        %v334 = vld [vmem:[#allocation3] sm:$0x1]
        %v335 = vmax.f32 %v203, %v204
        %336 = vmax.xlane.f32.xlu0 %v335
        %v337 = vpop.xlane.xlu0 %336
        %v338 = vmax.f32 %v205, %v206
        %339 = vmax.xlane.f32.xlu0 %v338
        %v340 = vpop.xlane.xlu0 %339
        %v341 = vmax.f32 %v207, %v208
        %342 = vmax.xlane.f32.xlu0 %v341
        %v343 = vpop.xlane.xlu0 %342
        %v344 = vmax.f32 %v209, %v210
        %345 = vmax.xlane.f32.xlu0 %v344
        %v346 = vpop.xlane.xlu0 %345
        %v351 = vperm.slane %v337, 0
        %v352 = vperm.slane %v337, 1
        %v353 = vperm.slane %v337, 2
        %v354 = vperm.slane %v337, 3
        %v355 = vperm.slane %v337, 4
        %v356 = vperm.slane %v337, 5
        %v357 = vperm.slane %v337, 6
        %v358 = vperm.slane %v337, 7
        %v359 = vperm.slane %v340, 0
        %v360 = vperm.slane %v340, 1
        %v361 = vperm.slane %v340, 2
        %v362 = vperm.slane %v340, 3
        %v363 = vperm.slane %v340, 4
        %v364 = vperm.slane %v340, 5
        %v365 = vperm.slane %v340, 6
        %v366 = vperm.slane %v340, 7
        %v367 = vperm.slane %v343, 0
        %v368 = vperm.slane %v343, 1
        %v369 = vperm.slane %v343, 2
        %v370 = vperm.slane %v343, 3
        %v371 = vperm.slane %v343, 4
        %v372 = vperm.slane %v343, 5
        %v373 = vperm.slane %v343, 6
        %v374 = vperm.slane %v343, 7
        %v375 = vperm.slane %v346, 0
        %v376 = vperm.slane %v346, 1
        %v377 = vperm.slane %v346, 2
        %v378 = vperm.slane %v346, 3
        %v379 = vperm.slane %v346, 4
        %v380 = vperm.slane %v346, 5
        %v381 = vperm.slane %v346, 6
        %v382 = vperm.slane %v346, 7
        %383 = vst [vmem:[#allocation1] ss:$9 sm:$0xff] %v351
        %s384 = scalar_lea.vmem [#allocation1], 1
        %385 = vst [vmem:[%s384] ss:$9 sm:$0xff] %v352
        %s386 = scalar_lea.vmem [#allocation1], 2
        %387 = vst [vmem:[%s386] ss:$9 sm:$0xff] %v353
        %s388 = scalar_lea.vmem [#allocation1], 3
        %389 = vst [vmem:[%s388] ss:$9 sm:$0xff] %v354
        %s390 = scalar_lea.vmem [#allocation1], 4
        %391 = vst [vmem:[%s390] ss:$9 sm:$0xff] %v355
        %s392 = scalar_lea.vmem [#allocation1], 5
        %393 = vst [vmem:[%s392] ss:$9 sm:$0xff] %v356
        %s394 = scalar_lea.vmem [#allocation1], 6
        %395 = vst [vmem:[%s394] ss:$9 sm:$0xff] %v357
        %s396 = scalar_lea.vmem [#allocation1], 7
        %397 = vst [vmem:[%s396] ss:$9 sm:$0xff] %v358
        %v398 = vld [vmem:[#allocation1] sm:$0xff]
        %399 = vst [vmem:[#allocation1] ss:$9 sm:$0xff] %v359
        %400 = vst [vmem:[%s384] ss:$9 sm:$0xff] %v360
        %401 = vst [vmem:[%s386] ss:$9 sm:$0xff] %v361
        %402 = vst [vmem:[%s388] ss:$9 sm:$0xff] %v362
        %403 = vst [vmem:[%s390] ss:$9 sm:$0xff] %v363
        %404 = vst [vmem:[%s392] ss:$9 sm:$0xff] %v364
        %405 = vst [vmem:[%s394] ss:$9 sm:$0xff] %v365
        %406 = vst [vmem:[%s396] ss:$9 sm:$0xff] %v366
        %v407 = vld [vmem:[#allocation1] sm:$0xff]
        %408 = vst [vmem:[#allocation1] ss:$9 sm:$0xff] %v367
        %409 = vst [vmem:[%s384] ss:$9 sm:$0xff] %v368
        %410 = vst [vmem:[%s386] ss:$9 sm:$0xff] %v369
        %411 = vst [vmem:[%s388] ss:$9 sm:$0xff] %v370
        %412 = vst [vmem:[%s390] ss:$9 sm:$0xff] %v371
        %413 = vst [vmem:[%s392] ss:$9 sm:$0xff] %v372
        %414 = vst [vmem:[%s394] ss:$9 sm:$0xff] %v373
        %415 = vst [vmem:[%s396] ss:$9 sm:$0xff] %v374
        %v416 = vld [vmem:[#allocation1] sm:$0xff]
        %417 = vst [vmem:[#allocation1] ss:$9 sm:$0xff] %v375
        %418 = vst [vmem:[%s384] ss:$9 sm:$0xff] %v376
        %419 = vst [vmem:[%s386] ss:$9 sm:$0xff] %v377
        %420 = vst [vmem:[%s388] ss:$9 sm:$0xff] %v378
        %421 = vst [vmem:[%s390] ss:$9 sm:$0xff] %v379
        %422 = vst [vmem:[%s392] ss:$9 sm:$0xff] %v380
        %423 = vst [vmem:[%s394] ss:$9 sm:$0xff] %v381
        %424 = vst [vmem:[%s396] ss:$9 sm:$0xff] %v382
        %v425 = vld [vmem:[#allocation1] sm:$0xff]
        %426 = vset.pattern.permute.xlu0 0
        %427 = vperm.xlu0 %426, %v398
        %v428 = vpop.permute.xlu0 %427
        %429 = vset.pattern.permute.xlu0 0
        %430 = vperm.xlu0 %429, %v407
        %v431 = vpop.permute.xlu0 %430
        %432 = vset.pattern.permute.xlu0 0
        %433 = vperm.xlu0 %432, %v416
        %v434 = vpop.permute.xlu0 %433
        %435 = vset.pattern.permute.xlu0 0
        %436 = vperm.xlu0 %435, %v425
        %v437 = vpop.permute.xlu0 %436
        %v438 = vperm.slane %v428, %v316
        %v439 = vperm.slane %v431, %v318
        %v440 = vsel %vm320, %v439, %v438
        %v441 = vperm.slane %v434, %v322
        %v442 = vsel %vm324, %v441, %v440
        %v443 = vperm.slane %v437, %v326
        %v444 = vsel %vm328, %v443, %v442
        %v446 = vmax.f32 %v334, %v444
        %447 = vst.msk [vmem:[#allocation3] sm:$0x1] %vm332, %v446
        // Predicated region
        $region37: #{channel_attention.1} parent=31 // pred_check
          %p448 = pneg %p196
        $region38: #{channel_attention.1} parent=31 // pred_check_branch
          %450 = sbr.rel (%p448) target = $region40
        $region39: #{channel_attention.1} parent=31 // pred_region
          %v451 = vld [vmem:[#allocation2] sm:$0x1]
          %v452 = vmul.f32 %v451, 0.00390625
          %v453 = vld [vmem:[#allocation3] sm:$0x1]
          %v455 = vperm.slane %v453, 0
          %vm457 = vcmask 1040384
          %v458 = vsel %vm457, %v452, %v455
          %v459 = vld [vmem:[%s1] sm:$0xff]
          %v460 = vld [vmem:[%s1 + $0x8] sm:$0xff]
          %v461 = vld [vmem:[%s1 + $0x10] sm:$0xff]
          %v462 = vld [vmem:[%s1 + $0x18] sm:$0xff]
          %vm463 = vcmask 261120
          %v465 = vsel %vm463, %v458, 0
          %467 = vmatpush.msra.mxu0 0.0
          %468 = vmatpush.msra.mxu0 0.0
          %469 = vmatpush.msra.mxu0 0.0
          %470 = vmatpush.msra.mxu0 0.0
          %471 = vmatpush.msra.mxu0 0.0
          %472 = vmatpush.msra.mxu0 0.0
          %473 = vmatpush.msra.mxu0 0.0
          %474 = vmatpush.msra.mxu0 0.0
          %475 = vmatpush.msra.mxu0 0.0
          %476 = vmatpush.msra.mxu0 0.0
          %477 = vmatpush.msra.mxu0 0.0
          %478 = vmatpush.msra.mxu0 0.0
          %479 = vmatpush.msra.mxu0 %v462
          %480 = vmatpush.msra.mxu0 %v461
          %481 = vmatpush.msra.mxu0 %v460
          %482 = vmatpush.msra.mxu0 %v459
          %483 = vmatmul.f32.gmra.mxu0 %v465
          %v484 = vpop.f32.mrf.mxu0
          %v485 = vadd.f32 0.0, %v484
          %486 = vdwg.mxu0
          %v487 = vmax.f32 %v485, 0.0
          %v488 = vld [vmem:[%s2] sm:$0xff]
          %vm489 = vcmask 64512
          %v491 = vsel %vm489, %v487, 0
          %493 = vmatpush.msra.mxu0 0.0
          %494 = vmatpush.msra.mxu0 0.0
          %495 = vmatpush.msra.mxu0 0.0
          %496 = vmatpush.msra.mxu0 0.0
          %497 = vmatpush.msra.mxu0 0.0
          %498 = vmatpush.msra.mxu0 0.0
          %499 = vmatpush.msra.mxu0 0.0
          %500 = vmatpush.msra.mxu0 0.0
          %501 = vmatpush.msra.mxu0 0.0
          %502 = vmatpush.msra.mxu0 0.0
          %503 = vmatpush.msra.mxu0 0.0
          %504 = vmatpush.msra.mxu0 0.0
          %505 = vmatpush.msra.mxu0 0.0
          %506 = vmatpush.msra.mxu0 0.0
          %507 = vmatpush.msra.mxu0 0.0
          %508 = vmatpush.msra.mxu0 %v488
          %509 = vmatmul.f32.gmra.mxu0 %v491
          %v510 = vpop.f32.mrf.mxu0
          %v511 = vadd.f32 0.0, %v510
          %512 = vdwg.mxu0
          %v514 = vrot.slane %v511, 1
          %v516 = vadd.f32 %v511, %v514
          %v517 = vsub.f32 0.0, %v516
          %v518 = vmul.f32 %v517, 1.442695
          %v519 = vpow.pop %v518
          %v520 = vadd.f32 %v519, 1.0
          %v521 = vrcp.pop %v520
          %v522 = vmul.f32 %v520, %v521
          %v523 = vsub.f32 1.0, %v522
          %v524 = vmul.f32 %v521, %v523
          %v525 = vadd.f32 %v521, %v524
          %vm526 = vweird.f32 %v520
          %vm527 = vweird.f32 %v521
          %vm528 = vmor %vm526, %vm527
          %v529 = vsel %vm528, %v521, %v525
          %v530 = vand.u32 2147483647, %v520
          %vm531 = vcmp.eq.f32.partialorder %v530, 8.507059e+37
          %v532 = vand.u32 %v520, 2147483648
          %v533 = vor.u32 1.1754944e-38, %v532
          %v534 = vsel %vm531, %v533, %v529
          %v535 = vmul.f32 1.0, %v534
          %536 = vst.msk [vmem:[%s185] sm:$0x1] %vm332, %v535
        $region40: #{channel_attention.1} parent=31 // pred_fallthru
          _
        %s537 = sand.u32 %s107, 1
        %s538 = scalar_lea.sflag [#allocation5], %s537
        %s539 = sand.u32 %s107, 1
        %s540 = scalar_lea.vmem [#allocation4], %s539
        // Predicated region
        $region41: #{channel_attention.1} parent=31 // pred_check
          %p541 = pneg %p117
        $region42: #{channel_attention.1} parent=31 // pred_check_branch
          %543 = sbr.rel (%p541) target = $region44
        $region43: #{channel_attention.1} parent=31 // pred_region
          %545 = vsyncadd %s538, 0
          %s546 = scalar_lea.hbm %s3, %s21
          %s548 = sshll.u32 %s540, 4
          %s549 = int_to_ptr.vmem [resolvable:$true] %s548
          %s550 = sshll.u32 %s546, 4
          %s551 = int_to_ptr.hbm [resolvable:$true] %s550
          %553 = dma.vmem_to_hbm [thread:$0]  %s549, 16, %s551, %s538
        $region44: #{channel_attention.1} parent=31 // pred_fallthru
          _
      $region32: #{channel_attention.1} parent=5 // pred_fallthru
        _
      %p554 = scmp.le.s32.totalorder 2, %s12
      // Predicated region
      $region45: #{channel_attention.1} parent=5 // pred_check
        %p555 = pneg %p554
      $region46: #{channel_attention.1} parent=5 // pred_check_branch
        %557 = sbr.rel (%p555) target = $region48
      $region47: #{channel_attention.1} parent=5 // pred_region
        %s558 = ssub.s32 %s12, 2
        // Predicated region
        $region49: #{channel_attention.1} parent=47 // pred_check
          %p559 = pneg %p123
        $region50: #{channel_attention.1} parent=47 // pred_check_branch
          %561 = sbr.rel (%p559) target = $region52
        $region51: #{channel_attention.1} parent=47 // pred_region
          %s562 = sand.u32 %s108, 1
          %s563 = scalar_lea.sflag [#allocation5], %s562
          %s564 = sand.u32 %s108, 1
          %s565 = scalar_lea.vmem [#allocation4], %s564
          %567 = dma.done %s563, 16
        $region52: #{channel_attention.1} parent=47 // pred_fallthru
          _
      $region48: #{channel_attention.1} parent=5 // pred_fallthru
        _
    $region6: #{channel_attention.1} parent=1 // loop_footer
      %s16 = sadd.s32 1, %s12
    $region7: #{channel_attention.1} parent=1 // loop_footer_branch
      %11 = sbr.rel target = $region3
    $region8: #{channel_attention.1} parent=1 // loop_exit
      _
    %568 = vsyncpa [#allocation5], 1
    %s569 = scalar_lea.sflag [#allocation5], 1
    %570 = vsyncpa %s569, 1

</llo_original>
